<compile_context>
chip_gen: v7x
topology: tpu7x:2x2x1
jax: 0.10.0
libtpu: 0.0.40
codegen_flags: <defaults>
</compile_context>

<pallas_src>
import math
import functools

import jax
import jax.numpy as jnp
from jax.experimental import pallas as pl
from jax.experimental.pallas import tpu as pltpu


def _unet1_kernel(xT_ref, t_ref, freq_ref, phase_ref, w_ref, s_ref, o_ref,
                  *, layer_dims):
    # Sinusoidal time embedding, feature-major (E, bn):
    #   rows [0, E/2)   -> sin(t * f)
    #   rows [E/2, E)   -> sin(t * f + pi/2) = cos(t * f)     (single EUP pass)
    ang = freq_ref[...] * t_ref[...] + phase_ref[...]          # (E,1)*(1,bn)+(E,1) -> (E,bn)
    h = xT_ref[...] + jnp.sin(ang)                             # x^T + t_embed^T

    def ffc(z, l):
        o, i = layer_dims[l]
        # Linear + folded eval-mode BatchNorm + ReLU, batch on the lane axis:
        #   relu(W_f[o,i] @ z[i,bn] + shift[o,1])
        y = jnp.dot(w_ref[l, :o, :i], z, preferred_element_type=jnp.float32)
        return jnp.maximum(y + s_ref[l, :o, :], 0.0)

    x1 = ffc(h, 0)            # down1
    x2 = ffc(x1, 1)           # down2
    x3 = ffc(x2, 2)           # bottom
    x4 = ffc(x3 + x2, 3)      # up1 (skip)
    x5 = ffc(x4 + x1, 4)      # up2 (skip)
    o_ref[...] = x5.astype(o_ref.dtype)


def _pick_bn(N, batch_tile):
    """Lane-axis (batch) tile size."""
    if N <= 256:
        return N                      # single full-extent block (block dim == array dim)
    # Tiled path: tiles must be a multiple of 128 on the lane axis; aim for >= 2 grid
    # steps so both v7x TensorCores get work, capped by batch_tile.
    bt = max(128, (batch_tile // 128) * 128)
    half_rounded = ((-(-N // 2)) + 127) // 128 * 128
    return max(128, min(bt, half_rounded))


def unet1_pallas(x, t, params, eps=1e-5, batch_tile=1024):
    """x: (N, embedding_dim) f32, t: (N,) f32.

    params: list of 5 tuples (W, b, gamma, beta, running_mean, running_var) in PyTorch
    layouts (W: (out, in)).  Returns (N, embedding_dim) f32 (eval-mode BatchNorm).
    """
    N, E = x.shape
    half = E // 2
    L = len(params)

    # Sinusoidal-embedding frequencies + phases as feature-major column vectors.
    c = math.log(10000.0) / (half - 1)
    freqs = jnp.exp(jnp.arange(half, dtype=jnp.float32) * -c)
    freq_col = jnp.concatenate([freqs, freqs]).reshape(E, 1)
    phase_col = jnp.concatenate(
        [jnp.zeros((half,), jnp.float32),
         jnp.full((half,), 0.5 * math.pi, jnp.float32)]).reshape(E, 1)

    # Fold eval-mode BatchNorm (+ Linear bias) into each layer, keeping the native
    # PyTorch (out, in) weight layout:
    #   s = gamma / sqrt(var + eps),  W_f = W * s[:,None],  shift = (b - mean)*s + beta.
    # Pack all layers into two zero-padded slabs (2 grid-invariant input streams).
    dmax = max(max(int(W.shape[0]), int(W.shape[1])) for (W, *_r) in params)
    layer_dims = tuple((int(W.shape[0]), int(W.shape[1])) for (W, *_r) in params)
    w_slab = jnp.zeros((L, dmax, dmax), jnp.float32)
    s_slab = jnp.zeros((L, dmax, 1), jnp.float32)
    for l, (W, b, g, beta, rm, rv) in enumerate(params):
        inv = (g / jnp.sqrt(rv + eps)).astype(jnp.float32)
        o, i = int(W.shape[0]), int(W.shape[1])
        w_slab = w_slab.at[l, :o, :i].set(W.astype(jnp.float32) * inv[:, None])
        s_slab = s_slab.at[l, :o, 0].set(((b - rm) * inv + beta).astype(jnp.float32))

    bn = _pick_bn(N, batch_tile)
    grid = (pl.cdiv(N, bn),)

    xT = jnp.transpose(x.astype(jnp.float32))            # (E, N): batch on the lane axis
    t_row = t.astype(jnp.float32).reshape(1, N)

    outT = pl.pallas_call(
        functools.partial(_unet1_kernel, layer_dims=layer_dims),
        out_shape=jax.ShapeDtypeStruct((E, N), jnp.float32),
        grid_spec=pltpu.PrefetchScalarGridSpec(
            num_scalar_prefetch=0,
            grid=grid,
            in_specs=[
                pl.BlockSpec((E, bn), lambda i: (0, i)),             # x^T tile
                pl.BlockSpec((1, bn), lambda i: (0, i)),             # t row tile
                pl.BlockSpec((E, 1), lambda i: (0, 0)),              # freqs
                pl.BlockSpec((E, 1), lambda i: (0, 0)),              # phases
                pl.BlockSpec((L, dmax, dmax), lambda i: (0, 0, 0)),  # folded weights
                pl.BlockSpec((L, dmax, 1), lambda i: (0, 0, 0)),     # folded shifts
            ],
            out_specs=pl.BlockSpec((E, bn), lambda i: (0, i)),
        ),
        compiler_params=pltpu.CompilerParams(
            dimension_semantics=("parallel",)),
    )(xT, t_row, freq_col, phase_col, w_slab, s_slab)

    return jnp.transpose(outT)                            # back to (N, E)


def _reference(x, t, params, eps=1e-5):
    """Pure-JAX reference matching the PyTorch UNet_1 forward (eval-mode BN)."""
    N, E = x.shape
    half = E // 2
    c = math.log(10000.0) / (half - 1)
    freqs = jnp.exp(jnp.arange(half, dtype=jnp.float32) * -c)
    ang = t[:, None] * freqs[None, :]
    t_embed = jnp.concatenate([jnp.sin(ang), jnp.cos(ang)], axis=-1)
    h = x + t_embed

    def ffc(z, W, b, g, beta, rm, rv):
        y = z @ W.T + b
        y = (y - rm) / jnp.sqrt(rv + eps) * g + beta
        return jnp.maximum(y, 0.0)

    x1 = ffc(h, *params[0])
    x2 = ffc(x1, *params[1])
    x3 = ffc(x2, *params[2])
    x4 = ffc(x3 + x2, *params[3])
    x5 = ffc(x4 + x1, *params[4])
    return x5


def _make_ffc_params(key, in_dim, out_dim):
    k1, k2, k3, k4, k5, k6 = jax.random.split(key, 6)
    W = 0.1 * jax.random.normal(k1, (out_dim, in_dim), jnp.float32)
    b = 0.1 * jax.random.normal(k2, (out_dim,), jnp.float32)
    g = 1.0 + 0.1 * jax.random.normal(k3, (out_dim,), jnp.float32)
    beta = 0.1 * jax.random.normal(k4, (out_dim,), jnp.float32)
    rm = 0.05 * jax.random.normal(k5, (out_dim,), jnp.float32)
    rv = 1.0 + 0.1 * jax.random.uniform(k6, (out_dim,), dtype=jnp.float32)
    return (W, b, g, beta, rm, rv)


if __name__ == "__main__":
    E, H = 32, 64                    # embedding_dim=32, hidden_dim=64

    key = jax.random.PRNGKey(0)
    kx, kt, k1, k2, k3, k4, k5, kx2, kt2 = jax.random.split(key, 9)

    params = [
        _make_ffc_params(k1, E, H),           # down1
        _make_ffc_params(k2, H, H // 2),      # down2
        _make_ffc_params(k3, H // 2, H // 2), # bottom
        _make_ffc_params(k4, H // 2, H),      # up1
        _make_ffc_params(k5, H, E),           # up2
    ]

    # Case 1: tiny batch (single full-extent block).
    N = 2
    x = jax.random.normal(kx, (N, E), jnp.float32)
    t = jax.random.uniform(kt, (N,), jnp.float32, 0.0, 100.0)
    out = jax.block_until_ready(unet1_pallas(x, t, params))
    ref = _reference(x, t, params)
    assert out.shape == (N, E), out.shape
    err1 = float(jnp.max(jnp.abs(out - ref)))
    assert jnp.allclose(out, ref, rtol=2e-4, atol=2e-4), err1

    # Case 2: batch large enough to exercise the tiled (multi-step, ragged last tile) path.
    N2 = 260
    x2 = jax.random.normal(kx2, (N2, E), jnp.float32)
    t2 = jax.random.uniform(kt2, (N2,), jnp.float32, 0.0, 100.0)
    out2 = jax.block_until_ready(unet1_pallas(x2, t2, params))
    ref2 = _reference(x2, t2, params)
    assert out2.shape == (N2, E), out2.shape
    err2 = float(jnp.max(jnp.abs(out2 - ref2)))
    assert jnp.allclose(out2, ref2, rtol=2e-4, atol=2e-4), err2

    print("KERNEL_OK")
</pallas_src>

<mosaic_0001>
module attributes {stable_mosaic.version = 11 : i64} {
  func.func @_unet1_kernel(%arg0: i32, %arg1: memref<32x2xf32, #tpu.memory_space<vmem>>, %arg2: memref<1x2xf32, #tpu.memory_space<vmem>>, %arg3: memref<32x1xf32, #tpu.memory_space<vmem>>, %arg4: memref<32x1xf32, #tpu.memory_space<vmem>>, %arg5: memref<5x64x64xf32, #tpu.memory_space<vmem>>, %arg6: memref<5x64x1xf32, #tpu.memory_space<vmem>>, %arg7: memref<32x2xf32, #tpu.memory_space<vmem>>) attributes {dimension_semantics = [#tpu.dimension_semantics<parallel>], iteration_bounds = array<i64: 1>, scalar_prefetch = 0 : i64, scratch_operands = 0 : i64, tpu.core_type = #tpu.core_type<tc>, window_params = [{transform_indices = @transform_0, window_bounds = array<i64: 32, 2>}, {transform_indices = @transform_1, window_bounds = array<i64: 1, 2>}, {pipeline_mode = #tpu.pipeline_mode<synchronous>, transform_indices = @transform_2, window_bounds = array<i64: 32, 1>}, {pipeline_mode = #tpu.pipeline_mode<synchronous>, transform_indices = @transform_3, window_bounds = array<i64: 32, 1>}, {pipeline_mode = #tpu.pipeline_mode<synchronous>, transform_indices = @transform_4, window_bounds = array<i64: 5, 64, 64>}, {pipeline_mode = #tpu.pipeline_mode<synchronous>, transform_indices = @transform_5, window_bounds = array<i64: 5, 64, 1>}, {transform_indices = @transform_6, window_bounds = array<i64: 32, 2>}]} {
    %c0 = arith.constant 0 : index
    %c0_0 = arith.constant 0 : index
    %0 = vector.load %arg3[%c0, %c0_0] : memref<32x1xf32, #tpu.memory_space<vmem>>, vector<32x1xf32>
    %c0_1 = arith.constant 0 : index
    %c0_2 = arith.constant 0 : index
    %1 = vector.load %arg2[%c0_1, %c0_2] : memref<1x2xf32, #tpu.memory_space<vmem>>, vector<1x2xf32>
    %2 = vector.broadcast %0 : vector<32x1xf32> to vector<32x2xf32>
    %3 = vector.broadcast %1 : vector<1x2xf32> to vector<32x2xf32>
    %4 = arith.mulf %2, %3 : vector<32x2xf32>
    %c0_3 = arith.constant 0 : index
    %c0_4 = arith.constant 0 : index
    %5 = vector.load %arg4[%c0_3, %c0_4] : memref<32x1xf32, #tpu.memory_space<vmem>>, vector<32x1xf32>
    %6 = vector.broadcast %5 : vector<32x1xf32> to vector<32x2xf32>
    %7 = arith.addf %4, %6 : vector<32x2xf32>
    %c0_5 = arith.constant 0 : index
    %c0_6 = arith.constant 0 : index
    %8 = vector.load %arg1[%c0_5, %c0_6] : memref<32x2xf32, #tpu.memory_space<vmem>>, vector<32x2xf32>
    %9 = math.sin %7 : vector<32x2xf32>
    %10 = arith.addf %8, %9 : vector<32x2xf32>
    %c0_7 = arith.constant 0 : index
    %c0_8 = arith.constant 0 : index
    %c0_9 = arith.constant 0 : index
    %11 = vector.load %arg5[%c0_7, %c0_8, %c0_9] : memref<5x64x64xf32, #tpu.memory_space<vmem>>, vector<1x64x32xf32>
    %12 = vector.shape_cast %11 : vector<1x64x32xf32> to vector<64x32xf32>
    %cst = arith.constant dense<0.000000e+00> : vector<64x2xf32>
    %13 = tpu.matmul %12, %10, %cst {dimension_numbers = #tpu.dot_dimension_numbers<[1], [0], [0], [1], [0, 0, 1, 1], [], []>} : vector<64x32xf32>, vector<32x2xf32>, vector<64x2xf32> -> vector<64x2xf32>
    %c0_10 = arith.constant 0 : index
    %c0_11 = arith.constant 0 : index
    %c0_12 = arith.constant 0 : index
    %14 = vector.load %arg6[%c0_10, %c0_11, %c0_12] : memref<5x64x1xf32, #tpu.memory_space<vmem>>, vector<1x64x1xf32>
    %15 = vector.shape_cast %14 : vector<1x64x1xf32> to vector<64x1xf32>
    %16 = vector.broadcast %15 : vector<64x1xf32> to vector<64x2xf32>
    %17 = arith.addf %13, %16 : vector<64x2xf32>
    %cst_13 = arith.constant 0.000000e+00 : f32
    %18 = vector.broadcast %cst_13 : f32 to vector<64x2xf32>
    %19 = arith.maximumf %17, %18 : vector<64x2xf32>
    %c1 = arith.constant 1 : index
    %c0_14 = arith.constant 0 : index
    %c0_15 = arith.constant 0 : index
    %20 = vector.load %arg5[%c1, %c0_14, %c0_15] : memref<5x64x64xf32, #tpu.memory_space<vmem>>, vector<1x32x64xf32>
    %21 = vector.shape_cast %20 : vector<1x32x64xf32> to vector<32x64xf32>
    %cst_16 = arith.constant dense<0.000000e+00> : vector<32x2xf32>
    %22 = tpu.matmul %21, %19, %cst_16 {dimension_numbers = #tpu.dot_dimension_numbers<[1], [0], [0], [1], [0, 0, 1, 1], [], []>} : vector<32x64xf32>, vector<64x2xf32>, vector<32x2xf32> -> vector<32x2xf32>
    %c1_17 = arith.constant 1 : index
    %c0_18 = arith.constant 0 : index
    %c0_19 = arith.constant 0 : index
    %23 = vector.load %arg6[%c1_17, %c0_18, %c0_19] : memref<5x64x1xf32, #tpu.memory_space<vmem>>, vector<1x32x1xf32>
    %24 = vector.shape_cast %23 : vector<1x32x1xf32> to vector<32x1xf32>
    %25 = vector.broadcast %24 : vector<32x1xf32> to vector<32x2xf32>
    %26 = arith.addf %22, %25 : vector<32x2xf32>
    %cst_20 = arith.constant 0.000000e+00 : f32
    %27 = vector.broadcast %cst_20 : f32 to vector<32x2xf32>
    %28 = arith.maximumf %26, %27 : vector<32x2xf32>
    %c2 = arith.constant 2 : index
    %c0_21 = arith.constant 0 : index
    %c0_22 = arith.constant 0 : index
    %29 = vector.load %arg5[%c2, %c0_21, %c0_22] : memref<5x64x64xf32, #tpu.memory_space<vmem>>, vector<1x32x32xf32>
    %30 = vector.shape_cast %29 : vector<1x32x32xf32> to vector<32x32xf32>
    %cst_23 = arith.constant dense<0.000000e+00> : vector<32x2xf32>
    %31 = tpu.matmul %30, %28, %cst_23 {dimension_numbers = #tpu.dot_dimension_numbers<[1], [0], [0], [1], [0, 0, 1, 1], [], []>} : vector<32x32xf32>, vector<32x2xf32>, vector<32x2xf32> -> vector<32x2xf32>
    %c2_24 = arith.constant 2 : index
    %c0_25 = arith.constant 0 : index
    %c0_26 = arith.constant 0 : index
    %32 = vector.load %arg6[%c2_24, %c0_25, %c0_26] : memref<5x64x1xf32, #tpu.memory_space<vmem>>, vector<1x32x1xf32>
    %33 = vector.shape_cast %32 : vector<1x32x1xf32> to vector<32x1xf32>
    %34 = vector.broadcast %33 : vector<32x1xf32> to vector<32x2xf32>
    %35 = arith.addf %31, %34 : vector<32x2xf32>
    %cst_27 = arith.constant 0.000000e+00 : f32
    %36 = vector.broadcast %cst_27 : f32 to vector<32x2xf32>
    %37 = arith.maximumf %35, %36 : vector<32x2xf32>
    %38 = arith.addf %37, %28 : vector<32x2xf32>
    %c3 = arith.constant 3 : index
    %c0_28 = arith.constant 0 : index
    %c0_29 = arith.constant 0 : index
    %39 = vector.load %arg5[%c3, %c0_28, %c0_29] : memref<5x64x64xf32, #tpu.memory_space<vmem>>, vector<1x64x32xf32>
    %40 = vector.shape_cast %39 : vector<1x64x32xf32> to vector<64x32xf32>
    %cst_30 = arith.constant dense<0.000000e+00> : vector<64x2xf32>
    %41 = tpu.matmul %40, %38, %cst_30 {dimension_numbers = #tpu.dot_dimension_numbers<[1], [0], [0], [1], [0, 0, 1, 1], [], []>} : vector<64x32xf32>, vector<32x2xf32>, vector<64x2xf32> -> vector<64x2xf32>
    %c3_31 = arith.constant 3 : index
    %c0_32 = arith.constant 0 : index
    %c0_33 = arith.constant 0 : index
    %42 = vector.load %arg6[%c3_31, %c0_32, %c0_33] : memref<5x64x1xf32, #tpu.memory_space<vmem>>, vector<1x64x1xf32>
    %43 = vector.shape_cast %42 : vector<1x64x1xf32> to vector<64x1xf32>
    %44 = vector.broadcast %43 : vector<64x1xf32> to vector<64x2xf32>
    %45 = arith.addf %41, %44 : vector<64x2xf32>
    %cst_34 = arith.constant 0.000000e+00 : f32
    %46 = vector.broadcast %cst_34 : f32 to vector<64x2xf32>
    %47 = arith.maximumf %45, %46 : vector<64x2xf32>
    %48 = arith.addf %47, %19 : vector<64x2xf32>
    %c4 = arith.constant 4 : index
    %c0_35 = arith.constant 0 : index
    %c0_36 = arith.constant 0 : index
    %49 = vector.load %arg5[%c4, %c0_35, %c0_36] : memref<5x64x64xf32, #tpu.memory_space<vmem>>, vector<1x32x64xf32>
    %50 = vector.shape_cast %49 : vector<1x32x64xf32> to vector<32x64xf32>
    %cst_37 = arith.constant dense<0.000000e+00> : vector<32x2xf32>
    %51 = tpu.matmul %50, %48, %cst_37 {dimension_numbers = #tpu.dot_dimension_numbers<[1], [0], [0], [1], [0, 0, 1, 1], [], []>} : vector<32x64xf32>, vector<64x2xf32>, vector<32x2xf32> -> vector<32x2xf32>
    %c4_38 = arith.constant 4 : index
    %c0_39 = arith.constant 0 : index
    %c0_40 = arith.constant 0 : index
    %52 = vector.load %arg6[%c4_38, %c0_39, %c0_40] : memref<5x64x1xf32, #tpu.memory_space<vmem>>, vector<1x32x1xf32>
    %53 = vector.shape_cast %52 : vector<1x32x1xf32> to vector<32x1xf32>
    %54 = vector.broadcast %53 : vector<32x1xf32> to vector<32x2xf32>
    %55 = arith.addf %51, %54 : vector<32x2xf32>
    %cst_41 = arith.constant 0.000000e+00 : f32
    %56 = vector.broadcast %cst_41 : f32 to vector<32x2xf32>
    %57 = arith.maximumf %55, %56 : vector<32x2xf32>
    %c0_42 = arith.constant 0 : index
    %c0_43 = arith.constant 0 : index
    %58 = vector.load %arg7[%c0_42, %c0_43] : memref<32x2xf32, #tpu.memory_space<vmem>>, vector<32x2xf32>
    tpu.vector_store %arg7[%c0_42, %c0_43], %57 {strides = array<i32>} : memref<32x2xf32, #tpu.memory_space<vmem>>, vector<32x2xf32>,
    return
  }
  func.func @transform_0(%arg0: i32) -> (i32, i32) {
    %c0_i32 = arith.constant 0 : i32
    %c0_i32_0 = arith.constant 0 : i32
    return %c0_i32, %arg0 : i32, i32
  }
  func.func @transform_1(%arg0: i32) -> (i32, i32) {
    %c0_i32 = arith.constant 0 : i32
    %c0_i32_0 = arith.constant 0 : i32
    return %c0_i32, %arg0 : i32, i32
  }
  func.func @transform_2(%arg0: i32) -> (i32, i32) {
    %c0_i32 = arith.constant 0 : i32
    %c0_i32_0 = arith.constant 0 : i32
    %c0_i32_1 = arith.constant 0 : i32
    return %c0_i32, %c0_i32_0 : i32, i32
  }
  func.func @transform_3(%arg0: i32) -> (i32, i32) {
    %c0_i32 = arith.constant 0 : i32
    %c0_i32_0 = arith.constant 0 : i32
    %c0_i32_1 = arith.constant 0 : i32
    return %c0_i32, %c0_i32_0 : i32, i32
  }
  func.func @transform_4(%arg0: i32) -> (i32, i32, i32) {
    %c0_i32 = arith.constant 0 : i32
    %c0_i32_0 = arith.constant 0 : i32
    %c0_i32_1 = arith.constant 0 : i32
    %c0_i32_2 = arith.constant 0 : i32
    return %c0_i32, %c0_i32_0, %c0_i32_1 : i32, i32, i32
  }
  func.func @transform_5(%arg0: i32) -> (i32, i32, i32) {
    %c0_i32 = arith.constant 0 : i32
    %c0_i32_0 = arith.constant 0 : i32
    %c0_i32_1 = arith.constant 0 : i32
    %c0_i32_2 = arith.constant 0 : i32
    return %c0_i32, %c0_i32_0, %c0_i32_1 : i32, i32, i32
  }
  func.func @transform_6(%arg0: i32) -> (i32, i32) {
    %c0_i32 = arith.constant 0 : i32
    %c0_i32_0 = arith.constant 0 : i32
    return %c0_i32, %arg0 : i32, i32
  }
}

</mosaic_0001>

<llo_original>
// kernel: tpu_custom_call.1
$region0: #{tpu_custom_call.1}
  #allocation0 [shape = 'u32[]', space=smem, size = 0x4, offset = 0x4, fixed_abs, tag = 'smem constant byte address 0x4 - core index']
  #allocation1 [shape = 'u32[144,128]{1,0:T(1,128)}', space=vmem, size = 0x12000, scoped, tag = 'internal scratch']
  %s0 = inlined_call_operand.vmem [shape: f32[32,2], index: 0, kind: input, shape index: {}]
  %s1 = inlined_call_operand.vmem [shape: f32[1,2], index: 1, kind: input, shape index: {}]
  %s2 = inlined_call_operand.vmem [shape: f32[32,1], index: 2, kind: input, shape index: {}]
  %s3 = inlined_call_operand.vmem [shape: f32[32,1], index: 3, kind: input, shape index: {}]
  %s4 = inlined_call_operand.vmem [shape: f32[5,64,64], index: 4, kind: input, shape index: {}]
  %s5 = inlined_call_operand.vmem [shape: f32[5,64,1], index: 5, kind: input, shape index: {}]
  %s6 = inlined_call_operand.vmem [shape: f32[32,2], index: 6, kind: output, shape index: {}]
  %s7 = sld [smem:[#allocation0]]
  $region34: #{tpu_custom_call.1} parent=0
    _
  %s9 = ssub.s32 1, %s7
  %s10 = scalar_select 0, %s9, %s7
  // Predicated region
  $region2: #{tpu_custom_call.1} parent=0 // pred_check
    _
  $region3: #{tpu_custom_call.1} parent=0 // pred_check_branch
    %12 = sbr.rel (0) target = $region5
  $region4: #{tpu_custom_call.1} parent=0 // pred_region
    _
  $region5: #{tpu_custom_call.1} parent=0 // pred_fallthru
    _
  // Predicated region
  $region6: #{tpu_custom_call.1} parent=0 // pred_check
    _
  $region7: #{tpu_custom_call.1} parent=0 // pred_check_branch
    %14 = sbr.rel (0) target = $region9
  $region8: #{tpu_custom_call.1} parent=0 // pred_region
    _
  $region9: #{tpu_custom_call.1} parent=0 // pred_fallthru
    _
  // Predicated region
  $region10: #{tpu_custom_call.1} parent=0 // pred_check
    _
  $region11: #{tpu_custom_call.1} parent=0 // pred_check_branch
    %16 = sbr.rel (0) target = $region13
  $region12: #{tpu_custom_call.1} parent=0 // pred_region
    _
  $region13: #{tpu_custom_call.1} parent=0 // pred_fallthru
    _
  // Predicated region
  $region14: #{tpu_custom_call.1} parent=0 // pred_check
    _
  $region15: #{tpu_custom_call.1} parent=0 // pred_check_branch
    %18 = sbr.rel (0) target = $region17
  $region16: #{tpu_custom_call.1} parent=0 // pred_region
    _
  $region17: #{tpu_custom_call.1} parent=0 // pred_fallthru
    _
  // Predicated region
  $region18: #{tpu_custom_call.1} parent=0 // pred_check
    _
  $region19: #{tpu_custom_call.1} parent=0 // pred_check_branch
    %20 = sbr.rel (0) target = $region21
  $region20: #{tpu_custom_call.1} parent=0 // pred_region
    _
  $region21: #{tpu_custom_call.1} parent=0 // pred_fallthru
    _
  // Predicated region
  $region22: #{tpu_custom_call.1} parent=0 // pred_check
    _
  $region23: #{tpu_custom_call.1} parent=0 // pred_check_branch
    %22 = sbr.rel (0) target = $region25
  $region24: #{tpu_custom_call.1} parent=0 // pred_region
    _
  $region25: #{tpu_custom_call.1} parent=0 // pred_fallthru
    _
  %v23 = vld [vmem:[%s2] sm:$0xff]
  %v24 = vld [vmem:[%s2 + $0x8] sm:$0xff]
  %v25 = vld [vmem:[%s2 + $0x10] sm:$0xff]
  %v26 = vld [vmem:[%s2 + $0x18] sm:$0xff]
  %v27 = vld [vmem:[%s1] sm:$0x1]
  %29 = vset.pattern.permute.xlu0 0
  %30 = vperm.xlu0 %29, %v23
  %v31 = vpop.permute.xlu0 %30
  %34 = vset.pattern.permute.xlu0 0
  %35 = vperm.xlu0 %34, %v24
  %v36 = vpop.permute.xlu0 %35
  %39 = vset.pattern.permute.xlu0 0
  %40 = vperm.xlu0 %39, %v25
  %v41 = vpop.permute.xlu0 %40
  %44 = vset.pattern.permute.xlu0 0
  %45 = vperm.xlu0 %44, %v26
  %v46 = vpop.permute.xlu0 %45
  %v49 = vlaneseq
  %v50 = vshrl.u32 %v49, 7
  %v51 = vsub.s32 0, %v50
  %v52 = vrot.slane %v27, %v51
  %v54 = vmul.f32 %v31, %v52
  %v55 = vmul.f32 %v36, %v52
  %v56 = vmul.f32 %v41, %v52
  %v57 = vmul.f32 %v46, %v52
  %v58 = vld [vmem:[%s3] sm:$0xff]
  %v59 = vld [vmem:[%s3 + $0x8] sm:$0xff]
  %v60 = vld [vmem:[%s3 + $0x10] sm:$0xff]
  %v61 = vld [vmem:[%s3 + $0x18] sm:$0xff]
  %63 = vset.pattern.permute.xlu0 0
  %64 = vperm.xlu0 %63, %v58
  %v65 = vpop.permute.xlu0 %64
  %68 = vset.pattern.permute.xlu0 0
  %69 = vperm.xlu0 %68, %v59
  %v70 = vpop.permute.xlu0 %69
  %73 = vset.pattern.permute.xlu0 0
  %74 = vperm.xlu0 %73, %v60
  %v75 = vpop.permute.xlu0 %74
  %78 = vset.pattern.permute.xlu0 0
  %79 = vperm.xlu0 %78, %v61
  %v80 = vpop.permute.xlu0 %79
  %v82 = vadd.f32 %v54, %v65
  %v83 = vadd.f32 %v55, %v70
  %v84 = vadd.f32 %v56, %v75
  %v85 = vadd.f32 %v57, %v80
  %v86 = vld [vmem:[%s0] sm:$0xff]
  %v87 = vld [vmem:[%s0 + $0x8] sm:$0xff]
  %v88 = vld [vmem:[%s0 + $0x10] sm:$0xff]
  %v89 = vld [vmem:[%s0 + $0x18] sm:$0xff]
  %v90 = vand.u32 2147483647, %v82
  %vm91 = vcmp.le.f32.partialorder %v90, 0.7853982
  %vm92 = vcmp.lt.s32.totalorder %v82, 0
  %v93 = vand.u32 %v82, 2139095040
  %v94 = vshrl.u32 %v93, 23
  %v95 = vsub.s32 %v94, 127
  %v96 = vand.u32 2147483647, %v82
  %v97 = vand.u32 %v96, 8388607
  %v98 = vor.u32 %v97, 8388608
  %v99 = vsub.s32 0, %v98
  %v100 = vadd.s32 %v95, 1
  %vm101 = vcmp.gt.s32.totalorder %v100, 0
  %v102 = vsel %vm101, %v100, 0
  %v103 = vshrl.u32 %v102, 5
  %v104 = vand.u32 %v102, 31
  %v105 = vsub.s32 32, %v104
  %v106 = vshrl.u32 683565275, %v105
  %v107 = vshll.u32 683565275, %v104
  %v108 = vshrl.u32 2475754826, %v105
  %v109 = vor.u32 %v107, %v108
  %v110 = vshll.u32 2475754826, %v104
  %v111 = vshrl.u32 2131351028, %v105
  %v112 = vor.u32 %v110, %v111
  %v113 = vshll.u32 2131351028, %v104
  %v114 = vshrl.u32 2102212464, %v105
  %v115 = vor.u32 %v113, %v114
  %v116 = vshll.u32 2102212464, %v104
  %v117 = vshrl.u32 920167782, %v105
  %v118 = vor.u32 %v116, %v117
  %v119 = vshll.u32 920167782, %v104
  %v120 = vshrl.u32 1326507024, %v105
  %v121 = vor.u32 %v119, %v120
  %vm122 = vcmp.lt.s32.totalorder %v103, 1
  %vm123 = vcmp.lt.s32.totalorder %v103, 2
  %vm124 = vcmp.lt.s32.totalorder %v103, 3
  %vm125 = vcmp.lt.s32.totalorder %v103, 4
  %v126 = vsel %vm122, %v106, %v109
  %v127 = vsel %vm125, %v115, 2102212464
  %v128 = vsel %vm124, %v112, %v127
  %v129 = vsel %vm123, %v126, %v128
  %v130 = vsel %vm122, %v109, %v112
  %v131 = vsel %vm125, %v118, 920167782
  %v132 = vsel %vm124, %v115, %v131
  %v133 = vsel %vm123, %v130, %v132
  %v134 = vsel %vm122, %v112, %v115
  %v135 = vsel %vm125, %v121, 1326507024
  %v136 = vsel %vm124, %v118, %v135
  %v137 = vsel %vm123, %v134, %v136
  %v138 = vshll.u32 %v98, 8
  %v139 = vmul.u32.u64.compose %v138, %v137
  %v140 = vextract.low.u32 %v139
  %v141 = vextract.high.u32 %v139
  %v142 = vmul.u32.u64.compose %v138, %v133
  %v143 = vextract.low.u32 %v142
  %v144 = vextract.high.u32 %v142
  %v145 = vmul.u32 %v138, %v129
  %v146 = vadd.s32 %v141, %v143
  %vm147 = vc.u32 %v141, %v143
  %v148 = vadd.s32 %v144, 1
  %v149 = vsel %vm147, %v148, %v144
  %v150 = vadd.s32 %v145, %v149
  %v151 = vadd.s32 %v150, 536870912
  %v152 = vshrl.u32 %v151, 30
  %v153 = vshll.u32 %v152, 30
  %v154 = vsub.s32 %v150, %v153
  %vm155 = vcmp.lt.s32.totalorder %v154, 0
  %v156 = vsub.s32 0, %v154
  %v157 = vsel %vm155, %v156, %v154
  %v158 = vclz %v157
  %v159 = vsub.s32 %v158, 2
  %vm160 = vcmp.gt.s32.totalorder 0, %v159
  %v161 = vsel %vm160, 0, %v159
  %v162 = vsub.s32 32, %v161
  %v163 = vshll.u32 %v154, %v161
  %v164 = vshrl.u32 %v146, %v162
  %v165 = vor.u32 %v163, %v164
  %v166 = vsub.s32 4294967266, %v161
  %v167 = vadd.s32 %v166, 127
  %v168 = vshll.u32 %v167, 23
  %v169 = vor.u32 4788187, %v168
  %v170 = vand.u32 2147483647, %v169
  %v172 = vcvt.s32.f32 %v165
  %v173 = vmul.f32 %v172, %v170
  %v174 = vxor.u32 %v173, 2147483648
  %v175 = vsel %vm92, %v174, %v173
  %v176 = vsub.s32 4, %v152
  %v177 = vsel %vm92, %v176, %v152
  %v178 = vsel %vm91, %v82, %v175
  %v179 = vsel %vm91, 0, %v177
  %v180 = vcosq.f32.pop %v178
  %v181 = vsinq.f32.pop %v178
  %vm182 = vweird.f32 %v82
  %v183 = vadd.s32 %v179, 3
  %v184 = vand.u32 %v183, 3
  %vm185 = vcmp.lt.s32.totalorder %v184, 2
  %vm186 = vcmp.eq.s32.totalorder %v184, 0
  %v187 = vxor.u32 %v181, 2147483648
  %v188 = vsel %vm186, %v180, %v187
  %vm189 = vcmp.eq.s32.totalorder %v184, 2
  %v190 = vxor.u32 %v180, 2147483648
  %v191 = vsel %vm189, %v190, %v181
  %v192 = vsel %vm185, %v188, %v191
  %v193 = vsel %vm182, nan, %v192
  %v194 = vand.u32 2147483647, %v83
  %vm195 = vcmp.le.f32.partialorder %v194, 0.7853982
  %vm196 = vcmp.lt.s32.totalorder %v83, 0
  %v197 = vand.u32 %v83, 2139095040
  %v198 = vshrl.u32 %v197, 23
  %v199 = vsub.s32 %v198, 127
  %v200 = vand.u32 2147483647, %v83
  %v201 = vand.u32 %v200, 8388607
  %v202 = vor.u32 %v201, 8388608
  %v203 = vsub.s32 0, %v202
  %v204 = vadd.s32 %v199, 1
  %vm205 = vcmp.gt.s32.totalorder %v204, 0
  %v206 = vsel %vm205, %v204, 0
  %v207 = vshrl.u32 %v206, 5
  %v208 = vand.u32 %v206, 31
  %v209 = vsub.s32 32, %v208
  %v210 = vshrl.u32 683565275, %v209
  %v211 = vshll.u32 683565275, %v208
  %v212 = vshrl.u32 2475754826, %v209
  %v213 = vor.u32 %v211, %v212
  %v214 = vshll.u32 2475754826, %v208
  %v215 = vshrl.u32 2131351028, %v209
  %v216 = vor.u32 %v214, %v215
  %v217 = vshll.u32 2131351028, %v208
  %v218 = vshrl.u32 2102212464, %v209
  %v219 = vor.u32 %v217, %v218
  %v220 = vshll.u32 2102212464, %v208
  %v221 = vshrl.u32 920167782, %v209
  %v222 = vor.u32 %v220, %v221
  %v223 = vshll.u32 920167782, %v208
  %v224 = vshrl.u32 1326507024, %v209
  %v225 = vor.u32 %v223, %v224
  %vm226 = vcmp.lt.s32.totalorder %v207, 1
  %vm227 = vcmp.lt.s32.totalorder %v207, 2
  %vm228 = vcmp.lt.s32.totalorder %v207, 3
  %vm229 = vcmp.lt.s32.totalorder %v207, 4
  %v230 = vsel %vm226, %v210, %v213
  %v231 = vsel %vm229, %v219, 2102212464
  %v232 = vsel %vm228, %v216, %v231
  %v233 = vsel %vm227, %v230, %v232
  %v234 = vsel %vm226, %v213, %v216
  %v235 = vsel %vm229, %v222, 920167782
  %v236 = vsel %vm228, %v219, %v235
  %v237 = vsel %vm227, %v234, %v236
  %v238 = vsel %vm226, %v216, %v219
  %v239 = vsel %vm229, %v225, 1326507024
  %v240 = vsel %vm228, %v222, %v239
  %v241 = vsel %vm227, %v238, %v240
  %v242 = vshll.u32 %v202, 8
  %v243 = vmul.u32.u64.compose %v242, %v241
  %v244 = vextract.low.u32 %v243
  %v245 = vextract.high.u32 %v243
  %v246 = vmul.u32.u64.compose %v242, %v237
  %v247 = vextract.low.u32 %v246
  %v248 = vextract.high.u32 %v246
  %v249 = vmul.u32 %v242, %v233
  %v250 = vadd.s32 %v245, %v247
  %vm251 = vc.u32 %v245, %v247
  %v252 = vadd.s32 %v248, 1
  %v253 = vsel %vm251, %v252, %v248
  %v254 = vadd.s32 %v249, %v253
  %v255 = vadd.s32 %v254, 536870912
  %v256 = vshrl.u32 %v255, 30
  %v257 = vshll.u32 %v256, 30
  %v258 = vsub.s32 %v254, %v257
  %vm259 = vcmp.lt.s32.totalorder %v258, 0
  %v260 = vsub.s32 0, %v258
  %v261 = vsel %vm259, %v260, %v258
  %v262 = vclz %v261
  %v263 = vsub.s32 %v262, 2
  %vm264 = vcmp.gt.s32.totalorder 0, %v263
  %v265 = vsel %vm264, 0, %v263
  %v266 = vsub.s32 32, %v265
  %v267 = vshll.u32 %v258, %v265
  %v268 = vshrl.u32 %v250, %v266
  %v269 = vor.u32 %v267, %v268
  %v270 = vsub.s32 4294967266, %v265
  %v271 = vadd.s32 %v270, 127
  %v272 = vshll.u32 %v271, 23
  %v273 = vor.u32 4788187, %v272
  %v274 = vand.u32 2147483647, %v273
  %v276 = vcvt.s32.f32 %v269
  %v277 = vmul.f32 %v276, %v274
  %v278 = vxor.u32 %v277, 2147483648
  %v279 = vsel %vm196, %v278, %v277
  %v280 = vsub.s32 4, %v256
  %v281 = vsel %vm196, %v280, %v256
  %v282 = vsel %vm195, %v83, %v279
  %v283 = vsel %vm195, 0, %v281
  %v284 = vcosq.f32.pop %v282
  %v285 = vsinq.f32.pop %v282
  %vm286 = vweird.f32 %v83
  %v287 = vadd.s32 %v283, 3
  %v288 = vand.u32 %v287, 3
  %vm289 = vcmp.lt.s32.totalorder %v288, 2
  %vm290 = vcmp.eq.s32.totalorder %v288, 0
  %v291 = vxor.u32 %v285, 2147483648
  %v292 = vsel %vm290, %v284, %v291
  %vm293 = vcmp.eq.s32.totalorder %v288, 2
  %v294 = vxor.u32 %v284, 2147483648
  %v295 = vsel %vm293, %v294, %v285
  %v296 = vsel %vm289, %v292, %v295
  %v297 = vsel %vm286, nan, %v296
  %v298 = vand.u32 2147483647, %v84
  %vm299 = vcmp.le.f32.partialorder %v298, 0.7853982
  %vm300 = vcmp.lt.s32.totalorder %v84, 0
  %v301 = vand.u32 %v84, 2139095040
  %v302 = vshrl.u32 %v301, 23
  %v303 = vsub.s32 %v302, 127
  %v304 = vand.u32 2147483647, %v84
  %v305 = vand.u32 %v304, 8388607
  %v306 = vor.u32 %v305, 8388608
  %v307 = vsub.s32 0, %v306
  %v308 = vadd.s32 %v303, 1
  %vm309 = vcmp.gt.s32.totalorder %v308, 0
  %v310 = vsel %vm309, %v308, 0
  %v311 = vshrl.u32 %v310, 5
  %v312 = vand.u32 %v310, 31
  %v313 = vsub.s32 32, %v312
  %v314 = vshrl.u32 683565275, %v313
  %v315 = vshll.u32 683565275, %v312
  %v316 = vshrl.u32 2475754826, %v313
  %v317 = vor.u32 %v315, %v316
  %v318 = vshll.u32 2475754826, %v312
  %v319 = vshrl.u32 2131351028, %v313
  %v320 = vor.u32 %v318, %v319
  %v321 = vshll.u32 2131351028, %v312
  %v322 = vshrl.u32 2102212464, %v313
  %v323 = vor.u32 %v321, %v322
  %v324 = vshll.u32 2102212464, %v312
  %v325 = vshrl.u32 920167782, %v313
  %v326 = vor.u32 %v324, %v325
  %v327 = vshll.u32 920167782, %v312
  %v328 = vshrl.u32 1326507024, %v313
  %v329 = vor.u32 %v327, %v328
  %vm330 = vcmp.lt.s32.totalorder %v311, 1
  %vm331 = vcmp.lt.s32.totalorder %v311, 2
  %vm332 = vcmp.lt.s32.totalorder %v311, 3
  %vm333 = vcmp.lt.s32.totalorder %v311, 4
  %v334 = vsel %vm330, %v314, %v317
  %v335 = vsel %vm333, %v323, 2102212464
  %v336 = vsel %vm332, %v320, %v335
  %v337 = vsel %vm331, %v334, %v336
  %v338 = vsel %vm330, %v317, %v320
  %v339 = vsel %vm333, %v326, 920167782
  %v340 = vsel %vm332, %v323, %v339
  %v341 = vsel %vm331, %v338, %v340
  %v342 = vsel %vm330, %v320, %v323
  %v343 = vsel %vm333, %v329, 1326507024
  %v344 = vsel %vm332, %v326, %v343
  %v345 = vsel %vm331, %v342, %v344
  %v346 = vshll.u32 %v306, 8
  %v347 = vmul.u32.u64.compose %v346, %v345
  %v348 = vextract.low.u32 %v347
  %v349 = vextract.high.u32 %v347
  %v350 = vmul.u32.u64.compose %v346, %v341
  %v351 = vextract.low.u32 %v350
  %v352 = vextract.high.u32 %v350
  %v353 = vmul.u32 %v346, %v337
  %v354 = vadd.s32 %v349, %v351
  %vm355 = vc.u32 %v349, %v351
  %v356 = vadd.s32 %v352, 1
  %v357 = vsel %vm355, %v356, %v352
  %v358 = vadd.s32 %v353, %v357
  %v359 = vadd.s32 %v358, 536870912
  %v360 = vshrl.u32 %v359, 30
  %v361 = vshll.u32 %v360, 30
  %v362 = vsub.s32 %v358, %v361
  %vm363 = vcmp.lt.s32.totalorder %v362, 0
  %v364 = vsub.s32 0, %v362
  %v365 = vsel %vm363, %v364, %v362
  %v366 = vclz %v365
  %v367 = vsub.s32 %v366, 2
  %vm368 = vcmp.gt.s32.totalorder 0, %v367
  %v369 = vsel %vm368, 0, %v367
  %v370 = vsub.s32 32, %v369
  %v371 = vshll.u32 %v362, %v369
  %v372 = vshrl.u32 %v354, %v370
  %v373 = vor.u32 %v371, %v372
  %v374 = vsub.s32 4294967266, %v369
  %v375 = vadd.s32 %v374, 127
  %v376 = vshll.u32 %v375, 23
  %v377 = vor.u32 4788187, %v376
  %v378 = vand.u32 2147483647, %v377
  %v380 = vcvt.s32.f32 %v373
  %v381 = vmul.f32 %v380, %v378
  %v382 = vxor.u32 %v381, 2147483648
  %v383 = vsel %vm300, %v382, %v381
  %v384 = vsub.s32 4, %v360
  %v385 = vsel %vm300, %v384, %v360
  %v386 = vsel %vm299, %v84, %v383
  %v387 = vsel %vm299, 0, %v385
  %v388 = vcosq.f32.pop %v386
  %v389 = vsinq.f32.pop %v386
  %vm390 = vweird.f32 %v84
  %v391 = vadd.s32 %v387, 3
  %v392 = vand.u32 %v391, 3
  %vm393 = vcmp.lt.s32.totalorder %v392, 2
  %vm394 = vcmp.eq.s32.totalorder %v392, 0
  %v395 = vxor.u32 %v389, 2147483648
  %v396 = vsel %vm394, %v388, %v395
  %vm397 = vcmp.eq.s32.totalorder %v392, 2
  %v398 = vxor.u32 %v388, 2147483648
  %v399 = vsel %vm397, %v398, %v389
  %v400 = vsel %vm393, %v396, %v399
  %v401 = vsel %vm390, nan, %v400
  %v402 = vand.u32 2147483647, %v85
  %vm403 = vcmp.le.f32.partialorder %v402, 0.7853982
  %vm404 = vcmp.lt.s32.totalorder %v85, 0
  %v405 = vand.u32 %v85, 2139095040
  %v406 = vshrl.u32 %v405, 23
  %v407 = vsub.s32 %v406, 127
  %v408 = vand.u32 2147483647, %v85
  %v409 = vand.u32 %v408, 8388607
  %v410 = vor.u32 %v409, 8388608
  %v411 = vsub.s32 0, %v410
  %v412 = vadd.s32 %v407, 1
  %vm413 = vcmp.gt.s32.totalorder %v412, 0
  %v414 = vsel %vm413, %v412, 0
  %v415 = vshrl.u32 %v414, 5
  %v416 = vand.u32 %v414, 31
  %v417 = vsub.s32 32, %v416
  %v418 = vshrl.u32 683565275, %v417
  %v419 = vshll.u32 683565275, %v416
  %v420 = vshrl.u32 2475754826, %v417
  %v421 = vor.u32 %v419, %v420
  %v422 = vshll.u32 2475754826, %v416
  %v423 = vshrl.u32 2131351028, %v417
  %v424 = vor.u32 %v422, %v423
  %v425 = vshll.u32 2131351028, %v416
  %v426 = vshrl.u32 2102212464, %v417
  %v427 = vor.u32 %v425, %v426
  %v428 = vshll.u32 2102212464, %v416
  %v429 = vshrl.u32 920167782, %v417
  %v430 = vor.u32 %v428, %v429
  %v431 = vshll.u32 920167782, %v416
  %v432 = vshrl.u32 1326507024, %v417
  %v433 = vor.u32 %v431, %v432
  %vm434 = vcmp.lt.s32.totalorder %v415, 1
  %vm435 = vcmp.lt.s32.totalorder %v415, 2
  %vm436 = vcmp.lt.s32.totalorder %v415, 3
  %vm437 = vcmp.lt.s32.totalorder %v415, 4
  %v438 = vsel %vm434, %v418, %v421
  %v439 = vsel %vm437, %v427, 2102212464
  %v440 = vsel %vm436, %v424, %v439
  %v441 = vsel %vm435, %v438, %v440
  %v442 = vsel %vm434, %v421, %v424
  %v443 = vsel %vm437, %v430, 920167782
  %v444 = vsel %vm436, %v427, %v443
  %v445 = vsel %vm435, %v442, %v444
  %v446 = vsel %vm434, %v424, %v427
  %v447 = vsel %vm437, %v433, 1326507024
  %v448 = vsel %vm436, %v430, %v447
  %v449 = vsel %vm435, %v446, %v448
  %v450 = vshll.u32 %v410, 8
  %v451 = vmul.u32.u64.compose %v450, %v449
  %v452 = vextract.low.u32 %v451
  %v453 = vextract.high.u32 %v451
  %v454 = vmul.u32.u64.compose %v450, %v445
  %v455 = vextract.low.u32 %v454
  %v456 = vextract.high.u32 %v454
  %v457 = vmul.u32 %v450, %v441
  %v458 = vadd.s32 %v453, %v455
  %vm459 = vc.u32 %v453, %v455
  %v460 = vadd.s32 %v456, 1
  %v461 = vsel %vm459, %v460, %v456
  %v462 = vadd.s32 %v457, %v461
  %v463 = vadd.s32 %v462, 536870912
  %v464 = vshrl.u32 %v463, 30
  %v465 = vshll.u32 %v464, 30
  %v466 = vsub.s32 %v462, %v465
  %vm467 = vcmp.lt.s32.totalorder %v466, 0
  %v468 = vsub.s32 0, %v466
  %v469 = vsel %vm467, %v468, %v466
  %v470 = vclz %v469
  %v471 = vsub.s32 %v470, 2
  %vm472 = vcmp.gt.s32.totalorder 0, %v471
  %v473 = vsel %vm472, 0, %v471
  %v474 = vsub.s32 32, %v473
  %v475 = vshll.u32 %v466, %v473
  %v476 = vshrl.u32 %v458, %v474
  %v477 = vor.u32 %v475, %v476
  %v478 = vsub.s32 4294967266, %v473
  %v479 = vadd.s32 %v478, 127
  %v480 = vshll.u32 %v479, 23
  %v481 = vor.u32 4788187, %v480
  %v482 = vand.u32 2147483647, %v481
  %v484 = vcvt.s32.f32 %v477
  %v485 = vmul.f32 %v484, %v482
  %v486 = vxor.u32 %v485, 2147483648
  %v487 = vsel %vm404, %v486, %v485
  %v488 = vsub.s32 4, %v464
  %v489 = vsel %vm404, %v488, %v464
  %v490 = vsel %vm403, %v85, %v487
  %v491 = vsel %vm403, 0, %v489
  %v492 = vcosq.f32.pop %v490
  %v493 = vsinq.f32.pop %v490
  %vm494 = vweird.f32 %v85
  %v495 = vadd.s32 %v491, 3
  %v496 = vand.u32 %v495, 3
  %vm497 = vcmp.lt.s32.totalorder %v496, 2
  %vm498 = vcmp.eq.s32.totalorder %v496, 0
  %v499 = vxor.u32 %v493, 2147483648
  %v500 = vsel %vm498, %v492, %v499
  %vm501 = vcmp.eq.s32.totalorder %v496, 2
  %v502 = vxor.u32 %v492, 2147483648
  %v503 = vsel %vm501, %v502, %v493
  %v504 = vsel %vm497, %v500, %v503
  %v505 = vsel %vm494, nan, %v504
  %v506 = vadd.f32 %v86, %v193
  %v507 = vadd.f32 %v87, %v297
  %v508 = vadd.f32 %v88, %v401
  %v509 = vadd.f32 %v89, %v505
  %v510 = vld [vmem:[%s4] sm:$0xff]
  %v511 = vld [vmem:[%s4 + $0x8] sm:$0xff]
  %v512 = vld [vmem:[%s4 + $0x10] sm:$0xff]
  %v513 = vld [vmem:[%s4 + $0x18] sm:$0xff]
  %v514 = vld [vmem:[%s4 + $0x20] sm:$0xff]
  %v515 = vld [vmem:[%s4 + $0x28] sm:$0xff]
  %v516 = vld [vmem:[%s4 + $0x30] sm:$0xff]
  %v517 = vld [vmem:[%s4 + $0x38] sm:$0xff]
  %v518 = vld [vmem:[%s5] sm:$0xff]
  %v519 = vld [vmem:[%s5 + $0x8] sm:$0xff]
  %v520 = vld [vmem:[%s5 + $0x10] sm:$0xff]
  %v521 = vld [vmem:[%s5 + $0x18] sm:$0xff]
  %v522 = vld [vmem:[%s5 + $0x20] sm:$0xff]
  %v523 = vld [vmem:[%s5 + $0x28] sm:$0xff]
  %v524 = vld [vmem:[%s5 + $0x30] sm:$0xff]
  %v525 = vld [vmem:[%s5 + $0x38] sm:$0xff]
  %527 = vset.pattern.permute.xlu0 0
  %528 = vperm.xlu0 %527, %v518
  %v529 = vpop.permute.xlu0 %528
  %532 = vset.pattern.permute.xlu0 0
  %533 = vperm.xlu0 %532, %v519
  %v534 = vpop.permute.xlu0 %533
  %537 = vset.pattern.permute.xlu0 0
  %538 = vperm.xlu0 %537, %v520
  %v539 = vpop.permute.xlu0 %538
  %542 = vset.pattern.permute.xlu0 0
  %543 = vperm.xlu0 %542, %v521
  %v544 = vpop.permute.xlu0 %543
  %547 = vset.pattern.permute.xlu0 0
  %548 = vperm.xlu0 %547, %v522
  %v549 = vpop.permute.xlu0 %548
  %552 = vset.pattern.permute.xlu0 0
  %553 = vperm.xlu0 %552, %v523
  %v554 = vpop.permute.xlu0 %553
  %557 = vset.pattern.permute.xlu0 0
  %558 = vperm.xlu0 %557, %v524
  %v559 = vpop.permute.xlu0 %558
  %562 = vset.pattern.permute.xlu0 0
  %563 = vperm.xlu0 %562, %v525
  %v564 = vpop.permute.xlu0 %563
  %vm566 = vcmask 261120
  %v568 = vsel %vm566, %v510, 0
  %v571 = vsel %vm566, %v511, 0
  %v574 = vsel %vm566, %v512, 0
  %v577 = vsel %vm566, %v513, 0
  %v580 = vsel %vm566, %v514, 0
  %v583 = vsel %vm566, %v515, 0
  %v586 = vsel %vm566, %v516, 0
  %v589 = vsel %vm566, %v517, 0
  %591 = vmatprep.subr.mxu0 0.0
  %592 = vmatpush1.msra.mxu0 %v506
  %593 = vmatprep.subr.mxu0 0.0
  %594 = vmatpush1.msra.mxu0 %v507
  %595 = vmatprep.subr.mxu0 0.0
  %596 = vmatpush1.msra.mxu0 %v508
  %597 = vmatprep.subr.mxu0 0.0
  %598 = vmatpush1.msra.mxu0 %v509
  %599 = vmatprep.subr.mxu0 0.0
  %600 = vmatpush1.msra.mxu0 0.0
  %601 = vmatprep.subr.mxu0 0.0
  %602 = vmatpush1.msra.mxu0 0.0
  %603 = vmatprep.subr.mxu0 0.0
  %604 = vmatpush1.msra.mxu0 0.0
  %605 = vmatprep.subr.mxu0 0.0
  %606 = vmatpush1.msra.mxu0 0.0
  %607 = vmatprep.subr.mxu0 0.0
  %608 = vmatpush1.msra.mxu0 0.0
  %609 = vmatprep.subr.mxu0 0.0
  %610 = vmatpush1.msra.mxu0 0.0
  %611 = vmatprep.subr.mxu0 0.0
  %612 = vmatpush1.msra.mxu0 0.0
  %613 = vmatprep.subr.mxu0 0.0
  %614 = vmatpush1.msra.mxu0 0.0
  %615 = vmatprep.subr.mxu0 0.0
  %616 = vmatpush1.msra.mxu0 0.0
  %617 = vmatprep.subr.mxu0 0.0
  %618 = vmatpush1.msra.mxu0 0.0
  %619 = vmatprep.subr.mxu0 0.0
  %620 = vmatpush1.msra.mxu0 0.0
  %621 = vmatprep.subr.mxu0 0.0
  %622 = vmatpush1.msra.mxu0 0.0
  %623 = vmatprep.subr.mxu0 0.0
  %624 = vmatpush1.msra.mxu0 0.0
  %625 = vmatprep.subr.mxu0 0.0
  %626 = vmatpush1.msra.mxu0 0.0
  %627 = vmatprep.subr.mxu0 0.0
  %628 = vmatpush1.msra.mxu0 0.0
  %629 = vmatprep.subr.mxu0 0.0
  %630 = vmatpush1.msra.mxu0 0.0
  %631 = vmatprep.subr.mxu0 0.0
  %632 = vmatpush1.msra.mxu0 0.0
  %633 = vmatprep.subr.mxu0 0.0
  %634 = vmatpush1.msra.mxu0 0.0
  %635 = vmatprep.subr.mxu0 0.0
  %636 = vmatpush1.msra.mxu0 0.0
  %637 = vmatprep.subr.mxu0 0.0
  %638 = vmatpush1.msra.mxu0 0.0
  %639 = vmatprep.subr.mxu0 0.0
  %640 = vmatpush1.msra.mxu0 0.0
  %641 = vmatprep.subr.mxu0 0.0
  %642 = vmatpush1.msra.mxu0 0.0
  %643 = vmatprep.subr.mxu0 0.0
  %644 = vmatpush1.msra.mxu0 0.0
  %645 = vmatprep.subr.mxu0 0.0
  %646 = vmatpush1.msra.mxu0 0.0
  %647 = vmatprep.subr.mxu0 0.0
  %648 = vmatpush1.msra.mxu0 0.0
  %649 = vmatprep.subr.mxu0 0.0
  %650 = vmatpush1.msra.mxu0 0.0
  %651 = vmatprep.subr.mxu0 0.0
  %652 = vmatpush1.msra.mxu0 0.0
  %653 = vmatprep.subr.mxu0 0.0
  %654 = vmatpush1.msra.mxu0 0.0
  %655 = vmatprep.mubr.f32.mxu0 0.0
  %656 = vmatmul.mubr.f32.gmra.mrb[0].mxu0 %v568
  %v657 = vpop.f32.mrb[0].mxu0
  %v658 = vadd.f32 %v529, %v657
  %v659 = vpop.f32.mrb[0].mxu0
  %660 = vmatprep.mubr.f32.mxu0 0.0
  %661 = vmatmul.mubr.f32.gmra.mrb[0].mxu0 %v571
  %v662 = vpop.f32.mrb[0].mxu0
  %v663 = vadd.f32 %v534, %v662
  %v664 = vpop.f32.mrb[0].mxu0
  %665 = vmatprep.mubr.f32.mxu0 0.0
  %666 = vmatmul.mubr.f32.gmra.mrb[0].mxu0 %v574
  %v667 = vpop.f32.mrb[0].mxu0
  %v668 = vadd.f32 %v539, %v667
  %v669 = vpop.f32.mrb[0].mxu0
  %670 = vmatprep.mubr.f32.mxu0 0.0
  %671 = vmatmul.mubr.f32.gmra.mrb[0].mxu0 %v577
  %v672 = vpop.f32.mrb[0].mxu0
  %v673 = vadd.f32 %v544, %v672
  %v674 = vpop.f32.mrb[0].mxu0
  %675 = vmatprep.mubr.f32.mxu0 0.0
  %676 = vmatmul.mubr.f32.gmra.mrb[0].mxu0 %v580
  %v677 = vpop.f32.mrb[0].mxu0
  %v678 = vadd.f32 %v549, %v677
  %v679 = vpop.f32.mrb[0].mxu0
  %680 = vmatprep.mubr.f32.mxu0 0.0
  %681 = vmatmul.mubr.f32.gmra.mrb[0].mxu0 %v583
  %v682 = vpop.f32.mrb[0].mxu0
  %v683 = vadd.f32 %v554, %v682
  %v684 = vpop.f32.mrb[0].mxu0
  %685 = vmatprep.mubr.f32.mxu0 0.0
  %686 = vmatmul.mubr.f32.gmra.mrb[0].mxu0 %v586
  %v687 = vpop.f32.mrb[0].mxu0
  %v688 = vadd.f32 %v559, %v687
  %v689 = vpop.f32.mrb[0].mxu0
  %690 = vmatprep.mubr.f32.mxu0 0.0
  %691 = vmatmul.mubr.f32.gmra.mrb[0].mxu0 %v589
  %v692 = vpop.f32.mrb[0].mxu0
  %v693 = vadd.f32 %v564, %v692
  %v694 = vpop.f32.mrb[0].mxu0
  %695 = vdwg.mxu0
  %v696 = vmax.f32 %v658, 0.0
  %v697 = vmax.f32 %v663, 0.0
  %v698 = vmax.f32 %v668, 0.0
  %v699 = vmax.f32 %v673, 0.0
  %v700 = vmax.f32 %v678, 0.0
  %v701 = vmax.f32 %v683, 0.0
  %v702 = vmax.f32 %v688, 0.0
  %v703 = vmax.f32 %v693, 0.0
  %s704 = scalar_lea.vmem %s4, 64
  %v705 = vld [vmem:[%s704] sm:$0xff]
  %v706 = vld [vmem:[%s704 + $0x8] sm:$0xff]
  %v707 = vld [vmem:[%s704 + $0x10] sm:$0xff]
  %v708 = vld [vmem:[%s704 + $0x18] sm:$0xff]
  %s709 = scalar_lea.vmem %s5, 64
  %v710 = vld [vmem:[%s709] sm:$0xff]
  %v711 = vld [vmem:[%s709 + $0x8] sm:$0xff]
  %v712 = vld [vmem:[%s709 + $0x10] sm:$0xff]
  %v713 = vld [vmem:[%s709 + $0x18] sm:$0xff]
  %715 = vset.pattern.permute.xlu0 0
  %716 = vperm.xlu0 %715, %v710
  %v717 = vpop.permute.xlu0 %716
  %720 = vset.pattern.permute.xlu0 0
  %721 = vperm.xlu0 %720, %v711
  %v722 = vpop.permute.xlu0 %721
  %725 = vset.pattern.permute.xlu0 0
  %726 = vperm.xlu0 %725, %v712
  %v727 = vpop.permute.xlu0 %726
  %730 = vset.pattern.permute.xlu0 0
  %731 = vperm.xlu0 %730, %v713
  %v732 = vpop.permute.xlu0 %731
  %vm734 = vcmask 523264
  %v736 = vsel %vm734, %v705, 0
  %v739 = vsel %vm734, %v706, 0
  %v742 = vsel %vm734, %v707, 0
  %v745 = vsel %vm734, %v708, 0
  %747 = vmatprep.subr.mxu0 0.0
  %748 = vmatpush1.msra.mxu0 %v696
  %749 = vmatprep.subr.mxu0 0.0
  %750 = vmatpush1.msra.mxu0 %v697
  %751 = vmatprep.subr.mxu0 0.0
  %752 = vmatpush1.msra.mxu0 %v698
  %753 = vmatprep.subr.mxu0 0.0
  %754 = vmatpush1.msra.mxu0 %v699
  %755 = vmatprep.subr.mxu0 0.0
  %756 = vmatpush1.msra.mxu0 %v700
  %757 = vmatprep.subr.mxu0 0.0
  %758 = vmatpush1.msra.mxu0 %v701
  %759 = vmatprep.subr.mxu0 0.0
  %760 = vmatpush1.msra.mxu0 %v702
  %761 = vmatprep.subr.mxu0 0.0
  %762 = vmatpush1.msra.mxu0 %v703
  %763 = vmatprep.subr.mxu0 0.0
  %764 = vmatpush1.msra.mxu0 0.0
  %765 = vmatprep.subr.mxu0 0.0
  %766 = vmatpush1.msra.mxu0 0.0
  %767 = vmatprep.subr.mxu0 0.0
  %768 = vmatpush1.msra.mxu0 0.0
  %769 = vmatprep.subr.mxu0 0.0
  %770 = vmatpush1.msra.mxu0 0.0
  %771 = vmatprep.subr.mxu0 0.0
  %772 = vmatpush1.msra.mxu0 0.0
  %773 = vmatprep.subr.mxu0 0.0
  %774 = vmatpush1.msra.mxu0 0.0
  %775 = vmatprep.subr.mxu0 0.0
  %776 = vmatpush1.msra.mxu0 0.0
  %777 = vmatprep.subr.mxu0 0.0
  %778 = vmatpush1.msra.mxu0 0.0
  %779 = vmatprep.subr.mxu0 0.0
  %780 = vmatpush1.msra.mxu0 0.0
  %781 = vmatprep.subr.mxu0 0.0
  %782 = vmatpush1.msra.mxu0 0.0
  %783 = vmatprep.subr.mxu0 0.0
  %784 = vmatpush1.msra.mxu0 0.0
  %785 = vmatprep.subr.mxu0 0.0
  %786 = vmatpush1.msra.mxu0 0.0
  %787 = vmatprep.subr.mxu0 0.0
  %788 = vmatpush1.msra.mxu0 0.0
  %789 = vmatprep.subr.mxu0 0.0
  %790 = vmatpush1.msra.mxu0 0.0
  %791 = vmatprep.subr.mxu0 0.0
  %792 = vmatpush1.msra.mxu0 0.0
  %793 = vmatprep.subr.mxu0 0.0
  %794 = vmatpush1.msra.mxu0 0.0
  %795 = vmatprep.subr.mxu0 0.0
  %796 = vmatpush1.msra.mxu0 0.0
  %797 = vmatprep.subr.mxu0 0.0
  %798 = vmatpush1.msra.mxu0 0.0
  %799 = vmatprep.subr.mxu0 0.0
  %800 = vmatpush1.msra.mxu0 0.0
  %801 = vmatprep.subr.mxu0 0.0
  %802 = vmatpush1.msra.mxu0 0.0
  %803 = vmatprep.subr.mxu0 0.0
  %804 = vmatpush1.msra.mxu0 0.0
  %805 = vmatprep.subr.mxu0 0.0
  %806 = vmatpush1.msra.mxu0 0.0
  %807 = vmatprep.subr.mxu0 0.0
  %808 = vmatpush1.msra.mxu0 0.0
  %809 = vmatprep.subr.mxu0 0.0
  %810 = vmatpush1.msra.mxu0 0.0
  %811 = vmatprep.mubr.f32.mxu0 0.0
  %812 = vmatmul.mubr.f32.gmra.mrb[0].mxu0 %v736
  %v813 = vpop.f32.mrb[0].mxu0
  %v814 = vadd.f32 %v717, %v813
  %v815 = vpop.f32.mrb[0].mxu0
  %816 = vmatprep.mubr.f32.mxu0 0.0
  %817 = vmatmul.mubr.f32.gmra.mrb[0].mxu0 %v739
  %v818 = vpop.f32.mrb[0].mxu0
  %v819 = vadd.f32 %v722, %v818
  %v820 = vpop.f32.mrb[0].mxu0
  %821 = vmatprep.mubr.f32.mxu0 0.0
  %822 = vmatmul.mubr.f32.gmra.mrb[0].mxu0 %v742
  %v823 = vpop.f32.mrb[0].mxu0
  %v824 = vadd.f32 %v727, %v823
  %v825 = vpop.f32.mrb[0].mxu0
  %826 = vmatprep.mubr.f32.mxu0 0.0
  %827 = vmatmul.mubr.f32.gmra.mrb[0].mxu0 %v745
  %v828 = vpop.f32.mrb[0].mxu0
  %v829 = vadd.f32 %v732, %v828
  %v830 = vpop.f32.mrb[0].mxu0
  %831 = vdwg.mxu0
  %v832 = vmax.f32 %v814, 0.0
  %v833 = vmax.f32 %v819, 0.0
  %v834 = vmax.f32 %v824, 0.0
  %v835 = vmax.f32 %v829, 0.0
  %s836 = scalar_lea.vmem %s4, 128
  %v837 = vld [vmem:[%s836] sm:$0xff]
  %v838 = vld [vmem:[%s836 + $0x8] sm:$0xff]
  %v839 = vld [vmem:[%s836 + $0x10] sm:$0xff]
  %v840 = vld [vmem:[%s836 + $0x18] sm:$0xff]
  %s841 = scalar_lea.vmem %s5, 128
  %v842 = vld [vmem:[%s841] sm:$0xff]
  %v843 = vld [vmem:[%s841 + $0x8] sm:$0xff]
  %v844 = vld [vmem:[%s841 + $0x10] sm:$0xff]
  %v845 = vld [vmem:[%s841 + $0x18] sm:$0xff]
  %847 = vset.pattern.permute.xlu0 0
  %848 = vperm.xlu0 %847, %v842
  %v849 = vpop.permute.xlu0 %848
  %852 = vset.pattern.permute.xlu0 0
  %853 = vperm.xlu0 %852, %v843
  %v854 = vpop.permute.xlu0 %853
  %857 = vset.pattern.permute.xlu0 0
  %858 = vperm.xlu0 %857, %v844
  %v859 = vpop.permute.xlu0 %858
  %862 = vset.pattern.permute.xlu0 0
  %863 = vperm.xlu0 %862, %v845
  %v864 = vpop.permute.xlu0 %863
  %v867 = vsel %vm566, %v837, 0
  %v870 = vsel %vm566, %v838, 0
  %v873 = vsel %vm566, %v839, 0
  %v876 = vsel %vm566, %v840, 0
  %878 = vmatprep.subr.mxu0 0.0
  %879 = vmatpush1.msra.mxu0 %v832
  %880 = vmatprep.subr.mxu0 0.0
  %881 = vmatpush1.msra.mxu0 %v833
  %882 = vmatprep.subr.mxu0 0.0
  %883 = vmatpush1.msra.mxu0 %v834
  %884 = vmatprep.subr.mxu0 0.0
  %885 = vmatpush1.msra.mxu0 %v835
  %886 = vmatprep.subr.mxu0 0.0
  %887 = vmatpush1.msra.mxu0 0.0
  %888 = vmatprep.subr.mxu0 0.0
  %889 = vmatpush1.msra.mxu0 0.0
  %890 = vmatprep.subr.mxu0 0.0
  %891 = vmatpush1.msra.mxu0 0.0
  %892 = vmatprep.subr.mxu0 0.0
  %893 = vmatpush1.msra.mxu0 0.0
  %894 = vmatprep.subr.mxu0 0.0
  %895 = vmatpush1.msra.mxu0 0.0
  %896 = vmatprep.subr.mxu0 0.0
  %897 = vmatpush1.msra.mxu0 0.0
  %898 = vmatprep.subr.mxu0 0.0
  %899 = vmatpush1.msra.mxu0 0.0
  %900 = vmatprep.subr.mxu0 0.0
  %901 = vmatpush1.msra.mxu0 0.0
  %902 = vmatprep.subr.mxu0 0.0
  %903 = vmatpush1.msra.mxu0 0.0
  %904 = vmatprep.subr.mxu0 0.0
  %905 = vmatpush1.msra.mxu0 0.0
  %906 = vmatprep.subr.mxu0 0.0
  %907 = vmatpush1.msra.mxu0 0.0
  %908 = vmatprep.subr.mxu0 0.0
  %909 = vmatpush1.msra.mxu0 0.0
  %910 = vmatprep.subr.mxu0 0.0
  %911 = vmatpush1.msra.mxu0 0.0
  %912 = vmatprep.subr.mxu0 0.0
  %913 = vmatpush1.msra.mxu0 0.0
  %914 = vmatprep.subr.mxu0 0.0
  %915 = vmatpush1.msra.mxu0 0.0
  %916 = vmatprep.subr.mxu0 0.0
  %917 = vmatpush1.msra.mxu0 0.0
  %918 = vmatprep.subr.mxu0 0.0
  %919 = vmatpush1.msra.mxu0 0.0
  %920 = vmatprep.subr.mxu0 0.0
  %921 = vmatpush1.msra.mxu0 0.0
  %922 = vmatprep.subr.mxu0 0.0
  %923 = vmatpush1.msra.mxu0 0.0
  %924 = vmatprep.subr.mxu0 0.0
  %925 = vmatpush1.msra.mxu0 0.0
  %926 = vmatprep.subr.mxu0 0.0
  %927 = vmatpush1.msra.mxu0 0.0
  %928 = vmatprep.subr.mxu0 0.0
  %929 = vmatpush1.msra.mxu0 0.0
  %930 = vmatprep.subr.mxu0 0.0
  %931 = vmatpush1.msra.mxu0 0.0
  %932 = vmatprep.subr.mxu0 0.0
  %933 = vmatpush1.msra.mxu0 0.0
  %934 = vmatprep.subr.mxu0 0.0
  %935 = vmatpush1.msra.mxu0 0.0
  %936 = vmatprep.subr.mxu0 0.0
  %937 = vmatpush1.msra.mxu0 0.0
  %938 = vmatprep.subr.mxu0 0.0
  %939 = vmatpush1.msra.mxu0 0.0
  %940 = vmatprep.subr.mxu0 0.0
  %941 = vmatpush1.msra.mxu0 0.0
  %942 = vmatprep.mubr.f32.mxu0 0.0
  %943 = vmatmul.mubr.f32.gmra.mrb[0].mxu0 %v867
  %v944 = vpop.f32.mrb[0].mxu0
  %v945 = vadd.f32 %v849, %v944
  %v946 = vpop.f32.mrb[0].mxu0
  %947 = vmatprep.mubr.f32.mxu0 0.0
  %948 = vmatmul.mubr.f32.gmra.mrb[0].mxu0 %v870
  %v949 = vpop.f32.mrb[0].mxu0
  %v950 = vadd.f32 %v854, %v949
  %v951 = vpop.f32.mrb[0].mxu0
  %952 = vmatprep.mubr.f32.mxu0 0.0
  %953 = vmatmul.mubr.f32.gmra.mrb[0].mxu0 %v873
  %v954 = vpop.f32.mrb[0].mxu0
  %v955 = vadd.f32 %v859, %v954
  %v956 = vpop.f32.mrb[0].mxu0
  %957 = vmatprep.mubr.f32.mxu0 0.0
  %958 = vmatmul.mubr.f32.gmra.mrb[0].mxu0 %v876
  %v959 = vpop.f32.mrb[0].mxu0
  %v960 = vadd.f32 %v864, %v959
  %v961 = vpop.f32.mrb[0].mxu0
  %962 = vdwg.mxu0
  %v963 = vmax.f32 %v945, 0.0
  %v964 = vmax.f32 %v950, 0.0
  %v965 = vmax.f32 %v955, 0.0
  %v966 = vmax.f32 %v960, 0.0
  %v967 = vadd.f32 %v963, %v832
  %v968 = vadd.f32 %v964, %v833
  %v969 = vadd.f32 %v965, %v834
  %v970 = vadd.f32 %v966, %v835
  %s971 = scalar_lea.vmem %s4, 192
  %v972 = vld [vmem:[%s971] sm:$0xff]
  %v973 = vld [vmem:[%s971 + $0x8] sm:$0xff]
  %v974 = vld [vmem:[%s971 + $0x10] sm:$0xff]
  %v975 = vld [vmem:[%s971 + $0x18] sm:$0xff]
  %v976 = vld [vmem:[%s971 + $0x20] sm:$0xff]
  %v977 = vld [vmem:[%s971 + $0x28] sm:$0xff]
  %v978 = vld [vmem:[%s971 + $0x30] sm:$0xff]
  %v979 = vld [vmem:[%s971 + $0x38] sm:$0xff]
  %s980 = scalar_lea.vmem %s5, 192
  %v981 = vld [vmem:[%s980] sm:$0xff]
  %v982 = vld [vmem:[%s980 + $0x8] sm:$0xff]
  %v983 = vld [vmem:[%s980 + $0x10] sm:$0xff]
  %v984 = vld [vmem:[%s980 + $0x18] sm:$0xff]
  %v985 = vld [vmem:[%s980 + $0x20] sm:$0xff]
  %v986 = vld [vmem:[%s980 + $0x28] sm:$0xff]
  %v987 = vld [vmem:[%s980 + $0x30] sm:$0xff]
  %v988 = vld [vmem:[%s980 + $0x38] sm:$0xff]
  %990 = vset.pattern.permute.xlu0 0
  %991 = vperm.xlu0 %990, %v981
  %v992 = vpop.permute.xlu0 %991
  %995 = vset.pattern.permute.xlu0 0
  %996 = vperm.xlu0 %995, %v982
  %v997 = vpop.permute.xlu0 %996
  %1000 = vset.pattern.permute.xlu0 0
  %1001 = vperm.xlu0 %1000, %v983
  %v1002 = vpop.permute.xlu0 %1001
  %1005 = vset.pattern.permute.xlu0 0
  %1006 = vperm.xlu0 %1005, %v984
  %v1007 = vpop.permute.xlu0 %1006
  %1010 = vset.pattern.permute.xlu0 0
  %1011 = vperm.xlu0 %1010, %v985
  %v1012 = vpop.permute.xlu0 %1011
  %1015 = vset.pattern.permute.xlu0 0
  %1016 = vperm.xlu0 %1015, %v986
  %v1017 = vpop.permute.xlu0 %1016
  %1020 = vset.pattern.permute.xlu0 0
  %1021 = vperm.xlu0 %1020, %v987
  %v1022 = vpop.permute.xlu0 %1021
  %1025 = vset.pattern.permute.xlu0 0
  %1026 = vperm.xlu0 %1025, %v988
  %v1027 = vpop.permute.xlu0 %1026
  %v1030 = vsel %vm566, %v972, 0
  %v1033 = vsel %vm566, %v973, 0
  %v1036 = vsel %vm566, %v974, 0
  %v1039 = vsel %vm566, %v975, 0
  %v1042 = vsel %vm566, %v976, 0
  %v1045 = vsel %vm566, %v977, 0
  %v1048 = vsel %vm566, %v978, 0
  %v1051 = vsel %vm566, %v979, 0
  %1053 = vmatprep.subr.mxu0 0.0
  %1054 = vmatpush1.msra.mxu0 %v967
  %1055 = vmatprep.subr.mxu0 0.0
  %1056 = vmatpush1.msra.mxu0 %v968
  %1057 = vmatprep.subr.mxu0 0.0
  %1058 = vmatpush1.msra.mxu0 %v969
  %1059 = vmatprep.subr.mxu0 0.0
  %1060 = vmatpush1.msra.mxu0 %v970
  %1061 = vmatprep.subr.mxu0 0.0
  %1062 = vmatpush1.msra.mxu0 0.0
  %1063 = vmatprep.subr.mxu0 0.0
  %1064 = vmatpush1.msra.mxu0 0.0
  %1065 = vmatprep.subr.mxu0 0.0
  %1066 = vmatpush1.msra.mxu0 0.0
  %1067 = vmatprep.subr.mxu0 0.0
  %1068 = vmatpush1.msra.mxu0 0.0
  %1069 = vmatprep.subr.mxu0 0.0
  %1070 = vmatpush1.msra.mxu0 0.0
  %1071 = vmatprep.subr.mxu0 0.0
  %1072 = vmatpush1.msra.mxu0 0.0
  %1073 = vmatprep.subr.mxu0 0.0
  %1074 = vmatpush1.msra.mxu0 0.0
  %1075 = vmatprep.subr.mxu0 0.0
  %1076 = vmatpush1.msra.mxu0 0.0
  %1077 = vmatprep.subr.mxu0 0.0
  %1078 = vmatpush1.msra.mxu0 0.0
  %1079 = vmatprep.subr.mxu0 0.0
  %1080 = vmatpush1.msra.mxu0 0.0
  %1081 = vmatprep.subr.mxu0 0.0
  %1082 = vmatpush1.msra.mxu0 0.0
  %1083 = vmatprep.subr.mxu0 0.0
  %1084 = vmatpush1.msra.mxu0 0.0
  %1085 = vmatprep.subr.mxu0 0.0
  %1086 = vmatpush1.msra.mxu0 0.0
  %1087 = vmatprep.subr.mxu0 0.0
  %1088 = vmatpush1.msra.mxu0 0.0
  %1089 = vmatprep.subr.mxu0 0.0
  %1090 = vmatpush1.msra.mxu0 0.0
  %1091 = vmatprep.subr.mxu0 0.0
  %1092 = vmatpush1.msra.mxu0 0.0
  %1093 = vmatprep.subr.mxu0 0.0
  %1094 = vmatpush1.msra.mxu0 0.0
  %1095 = vmatprep.subr.mxu0 0.0
  %1096 = vmatpush1.msra.mxu0 0.0
  %1097 = vmatprep.subr.mxu0 0.0
  %1098 = vmatpush1.msra.mxu0 0.0
  %1099 = vmatprep.subr.mxu0 0.0
  %1100 = vmatpush1.msra.mxu0 0.0
  %1101 = vmatprep.subr.mxu0 0.0
  %1102 = vmatpush1.msra.mxu0 0.0
  %1103 = vmatprep.subr.mxu0 0.0
  %1104 = vmatpush1.msra.mxu0 0.0
  %1105 = vmatprep.subr.mxu0 0.0
  %1106 = vmatpush1.msra.mxu0 0.0
  %1107 = vmatprep.subr.mxu0 0.0
  %1108 = vmatpush1.msra.mxu0 0.0
  %1109 = vmatprep.subr.mxu0 0.0
  %1110 = vmatpush1.msra.mxu0 0.0
  %1111 = vmatprep.subr.mxu0 0.0
  %1112 = vmatpush1.msra.mxu0 0.0
  %1113 = vmatprep.subr.mxu0 0.0
  %1114 = vmatpush1.msra.mxu0 0.0
  %1115 = vmatprep.subr.mxu0 0.0
  %1116 = vmatpush1.msra.mxu0 0.0
  %1117 = vmatprep.mubr.f32.mxu0 0.0
  %1118 = vmatmul.mubr.f32.gmra.mrb[0].mxu0 %v1030
  %v1119 = vpop.f32.mrb[0].mxu0
  %v1120 = vadd.f32 %v992, %v1119
  %v1121 = vpop.f32.mrb[0].mxu0
  %1122 = vmatprep.mubr.f32.mxu0 0.0
  %1123 = vmatmul.mubr.f32.gmra.mrb[0].mxu0 %v1033
  %v1124 = vpop.f32.mrb[0].mxu0
  %v1125 = vadd.f32 %v997, %v1124
  %v1126 = vpop.f32.mrb[0].mxu0
  %1127 = vmatprep.mubr.f32.mxu0 0.0
  %1128 = vmatmul.mubr.f32.gmra.mrb[0].mxu0 %v1036
  %v1129 = vpop.f32.mrb[0].mxu0
  %v1130 = vadd.f32 %v1002, %v1129
  %v1131 = vpop.f32.mrb[0].mxu0
  %1132 = vmatprep.mubr.f32.mxu0 0.0
  %1133 = vmatmul.mubr.f32.gmra.mrb[0].mxu0 %v1039
  %v1134 = vpop.f32.mrb[0].mxu0
  %v1135 = vadd.f32 %v1007, %v1134
  %v1136 = vpop.f32.mrb[0].mxu0
  %1137 = vmatprep.mubr.f32.mxu0 0.0
  %1138 = vmatmul.mubr.f32.gmra.mrb[0].mxu0 %v1042
  %v1139 = vpop.f32.mrb[0].mxu0
  %v1140 = vadd.f32 %v1012, %v1139
  %v1141 = vpop.f32.mrb[0].mxu0
  %1142 = vmatprep.mubr.f32.mxu0 0.0
  %1143 = vmatmul.mubr.f32.gmra.mrb[0].mxu0 %v1045
  %v1144 = vpop.f32.mrb[0].mxu0
  %v1145 = vadd.f32 %v1017, %v1144
  %v1146 = vpop.f32.mrb[0].mxu0
  %1147 = vmatprep.mubr.f32.mxu0 0.0
  %1148 = vmatmul.mubr.f32.gmra.mrb[0].mxu0 %v1048
  %v1149 = vpop.f32.mrb[0].mxu0
  %v1150 = vadd.f32 %v1022, %v1149
  %v1151 = vpop.f32.mrb[0].mxu0
  %1152 = vmatprep.mubr.f32.mxu0 0.0
  %1153 = vmatmul.mubr.f32.gmra.mrb[0].mxu0 %v1051
  %v1154 = vpop.f32.mrb[0].mxu0
  %v1155 = vadd.f32 %v1027, %v1154
  %v1156 = vpop.f32.mrb[0].mxu0
  %1157 = vdwg.mxu0
  %v1158 = vmax.f32 %v1120, 0.0
  %v1159 = vmax.f32 %v1125, 0.0
  %v1160 = vmax.f32 %v1130, 0.0
  %v1161 = vmax.f32 %v1135, 0.0
  %v1162 = vmax.f32 %v1140, 0.0
  %v1163 = vmax.f32 %v1145, 0.0
  %v1164 = vmax.f32 %v1150, 0.0
  %v1165 = vmax.f32 %v1155, 0.0
  %v1166 = vadd.f32 %v1158, %v696
  %v1167 = vadd.f32 %v1159, %v697
  %v1168 = vadd.f32 %v1160, %v698
  %v1169 = vadd.f32 %v1161, %v699
  %v1170 = vadd.f32 %v1162, %v700
  %v1171 = vadd.f32 %v1163, %v701
  %v1172 = vadd.f32 %v1164, %v702
  %v1173 = vadd.f32 %v1165, %v703
  %s1174 = scalar_lea.vmem %s4, 256
  %v1175 = vld [vmem:[%s1174] sm:$0xff]
  %v1176 = vld [vmem:[%s1174 + $0x8] sm:$0xff]
  %v1177 = vld [vmem:[%s1174 + $0x10] sm:$0xff]
  %v1178 = vld [vmem:[%s1174 + $0x18] sm:$0xff]
  %s1179 = scalar_lea.vmem %s5, 256
  %v1180 = vld [vmem:[%s1179] sm:$0xff]
  %v1181 = vld [vmem:[%s1179 + $0x8] sm:$0xff]
  %v1182 = vld [vmem:[%s1179 + $0x10] sm:$0xff]
  %v1183 = vld [vmem:[%s1179 + $0x18] sm:$0xff]
  %1185 = vset.pattern.permute.xlu0 0
  %1186 = vperm.xlu0 %1185, %v1180
  %v1187 = vpop.permute.xlu0 %1186
  %1190 = vset.pattern.permute.xlu0 0
  %1191 = vperm.xlu0 %1190, %v1181
  %v1192 = vpop.permute.xlu0 %1191
  %1195 = vset.pattern.permute.xlu0 0
  %1196 = vperm.xlu0 %1195, %v1182
  %v1197 = vpop.permute.xlu0 %1196
  %1200 = vset.pattern.permute.xlu0 0
  %1201 = vperm.xlu0 %1200, %v1183
  %v1202 = vpop.permute.xlu0 %1201
  %v1205 = vsel %vm734, %v1175, 0
  %v1208 = vsel %vm734, %v1176, 0
  %v1211 = vsel %vm734, %v1177, 0
  %v1214 = vsel %vm734, %v1178, 0
  %1216 = vmatprep.subr.mxu0 0.0
  %1217 = vmatpush1.msra.mxu0 %v1166
  %1218 = vmatprep.subr.mxu0 0.0
  %1219 = vmatpush1.msra.mxu0 %v1167
  %1220 = vmatprep.subr.mxu0 0.0
  %1221 = vmatpush1.msra.mxu0 %v1168
  %1222 = vmatprep.subr.mxu0 0.0
  %1223 = vmatpush1.msra.mxu0 %v1169
  %1224 = vmatprep.subr.mxu0 0.0
  %1225 = vmatpush1.msra.mxu0 %v1170
  %1226 = vmatprep.subr.mxu0 0.0
  %1227 = vmatpush1.msra.mxu0 %v1171
  %1228 = vmatprep.subr.mxu0 0.0
  %1229 = vmatpush1.msra.mxu0 %v1172
  %1230 = vmatprep.subr.mxu0 0.0
  %1231 = vmatpush1.msra.mxu0 %v1173
  %1232 = vmatprep.subr.mxu0 0.0
  %1233 = vmatpush1.msra.mxu0 0.0
  %1234 = vmatprep.subr.mxu0 0.0
  %1235 = vmatpush1.msra.mxu0 0.0
  %1236 = vmatprep.subr.mxu0 0.0
  %1237 = vmatpush1.msra.mxu0 0.0
  %1238 = vmatprep.subr.mxu0 0.0
  %1239 = vmatpush1.msra.mxu0 0.0
  %1240 = vmatprep.subr.mxu0 0.0
  %1241 = vmatpush1.msra.mxu0 0.0
  %1242 = vmatprep.subr.mxu0 0.0
  %1243 = vmatpush1.msra.mxu0 0.0
  %1244 = vmatprep.subr.mxu0 0.0
  %1245 = vmatpush1.msra.mxu0 0.0
  %1246 = vmatprep.subr.mxu0 0.0
  %1247 = vmatpush1.msra.mxu0 0.0
  %1248 = vmatprep.subr.mxu0 0.0
  %1249 = vmatpush1.msra.mxu0 0.0
  %1250 = vmatprep.subr.mxu0 0.0
  %1251 = vmatpush1.msra.mxu0 0.0
  %1252 = vmatprep.subr.mxu0 0.0
  %1253 = vmatpush1.msra.mxu0 0.0
  %1254 = vmatprep.subr.mxu0 0.0
  %1255 = vmatpush1.msra.mxu0 0.0
  %1256 = vmatprep.subr.mxu0 0.0
  %1257 = vmatpush1.msra.mxu0 0.0
  %1258 = vmatprep.subr.mxu0 0.0
  %1259 = vmatpush1.msra.mxu0 0.0
  %1260 = vmatprep.subr.mxu0 0.0
  %1261 = vmatpush1.msra.mxu0 0.0
  %1262 = vmatprep.subr.mxu0 0.0
  %1263 = vmatpush1.msra.mxu0 0.0
  %1264 = vmatprep.subr.mxu0 0.0
  %1265 = vmatpush1.msra.mxu0 0.0
  %1266 = vmatprep.subr.mxu0 0.0
  %1267 = vmatpush1.msra.mxu0 0.0
  %1268 = vmatprep.subr.mxu0 0.0
  %1269 = vmatpush1.msra.mxu0 0.0
  %1270 = vmatprep.subr.mxu0 0.0
  %1271 = vmatpush1.msra.mxu0 0.0
  %1272 = vmatprep.subr.mxu0 0.0
  %1273 = vmatpush1.msra.mxu0 0.0
  %1274 = vmatprep.subr.mxu0 0.0
  %1275 = vmatpush1.msra.mxu0 0.0
  %1276 = vmatprep.subr.mxu0 0.0
  %1277 = vmatpush1.msra.mxu0 0.0
  %1278 = vmatprep.subr.mxu0 0.0
  %1279 = vmatpush1.msra.mxu0 0.0
  %1280 = vmatprep.mubr.f32.mxu0 0.0
  %1281 = vmatmul.mubr.f32.gmra.mrb[0].mxu0 %v1205
  %v1282 = vpop.f32.mrb[0].mxu0
  %v1283 = vadd.f32 %v1187, %v1282
  %v1284 = vpop.f32.mrb[0].mxu0
  %1285 = vmatprep.mubr.f32.mxu0 0.0
  %1286 = vmatmul.mubr.f32.gmra.mrb[0].mxu0 %v1208
  %v1287 = vpop.f32.mrb[0].mxu0
  %v1288 = vadd.f32 %v1192, %v1287
  %v1289 = vpop.f32.mrb[0].mxu0
  %1290 = vmatprep.mubr.f32.mxu0 0.0
  %1291 = vmatmul.mubr.f32.gmra.mrb[0].mxu0 %v1211
  %v1292 = vpop.f32.mrb[0].mxu0
  %v1293 = vadd.f32 %v1197, %v1292
  %v1294 = vpop.f32.mrb[0].mxu0
  %1295 = vmatprep.mubr.f32.mxu0 0.0
  %1296 = vmatmul.mubr.f32.gmra.mrb[0].mxu0 %v1214
  %v1297 = vpop.f32.mrb[0].mxu0
  %v1298 = vadd.f32 %v1202, %v1297
  %v1299 = vpop.f32.mrb[0].mxu0
  %1300 = vdwg.mxu0
  %v1301 = vmax.f32 %v1283, 0.0
  %v1302 = vmax.f32 %v1288, 0.0
  %v1303 = vmax.f32 %v1293, 0.0
  %v1304 = vmax.f32 %v1298, 0.0
  %vm1305 = vcmask 15360
  %1306 = vst.msk [vmem:[%s6] sm:$0xff] %vm1305, %v1301
  %1307 = vst.msk [vmem:[%s6 + $0x8] sm:$0xff] %vm1305, %v1302
  %1308 = vst.msk [vmem:[%s6 + $0x10] sm:$0xff] %vm1305, %v1303
  %1309 = vst.msk [vmem:[%s6 + $0x18] sm:$0xff] %vm1305, %v1304
  // Predicated region
  $region26: #{tpu_custom_call.1} parent=0 // pred_check
    _
  $region27: #{tpu_custom_call.1} parent=0 // pred_check_branch
    %1311 = sbr.rel (0) target = $region29
  $region28: #{tpu_custom_call.1} parent=0 // pred_region
    _
  $region29: #{tpu_custom_call.1} parent=0 // pred_fallthru
    _
  // Predicated region
  $region30: #{tpu_custom_call.1} parent=0 // pred_check
    _
  $region31: #{tpu_custom_call.1} parent=0 // pred_check_branch
    %1313 = sbr.rel (0) target = $region33
  $region32: #{tpu_custom_call.1} parent=0 // pred_region
    _
  $region33: #{tpu_custom_call.1} parent=0 // pred_fallthru
    _

</llo_original>
